<compile_context>
chip_gen: v7x
topology: tpu7x:2x2x1
jax: 0.10.0
libtpu: 0.0.40
codegen_flags: <defaults>
</compile_context>

<pallas_src>
import math
import jax
import jax.numpy as jnp
from jax.experimental import pallas as pl
from jax.experimental.pallas import tpu as pltpu


# ----------------------------------------------------------------------------
# Synthetic network configuration
# ----------------------------------------------------------------------------
INPUT_DIM = 32
LAYER_CONFIG = [
    {"neurons": 64, "activation": "relu"},
    {"neurons": 32, "activation": "tanh"},
    {"neurons": 16, "activation": "relu"},
]
PROBLEM_TYPE = "regression"            # => identity head (no sigmoid/softmax)
OUT_DIM = LAYER_CONFIG[-1]["neurons"]  # 16
MAX_TILE_B = 2048                      # batch-tile cap (multiple of 8)

_NUM_LAYERS = len(LAYER_CONFIG)
_BIAS_OFFSETS = []
_off = 0
for _conf in LAYER_CONFIG:
    _BIAS_OFFSETS.append(_off)
    _off += _conf["neurons"]
_BIAS_TOTAL = _off                     # 112


def _apply_activation(h, name, alpha=0.01):
    # Mirrors NeuralNetwork._get_activation (alpha default 0.01 from layer conf).
    if name == "relu":
        return jnp.maximum(h, 0.0)
    if name == "leaky_relu":
        return jnp.where(h > 0, h, alpha * h)
    if name == "elu":
        return jnp.where(h > 0, h, alpha * (jnp.exp(h) - 1.0))
    if name == "tanh":
        return jnp.tanh(h)
    if name == "sigmoid":
        return 1.0 / (1.0 + jnp.exp(-h))
    if name == "linear":
        return h
    raise ValueError(f"Unsupported activation: {name}")


# ----------------------------------------------------------------------------
# Pallas kernel: fused 3-layer MLP forward for one batch tile
# ----------------------------------------------------------------------------
def mlp_kernel(x_ref, *rest):
    # rest = (w1_ref, ..., wN_ref, b_all_ref, o_ref)
    w_refs = rest[:_NUM_LAYERS]
    b_all_ref = rest[_NUM_LAYERS]
    o_ref = rest[_NUM_LAYERS + 1]

    b_all = b_all_ref[...]                 # (1, 112) f32, one vreg row
    h = x_ref[...]                         # (tile_b, 32) f32

    for li, conf in enumerate(LAYER_CONFIG):
        n = conf["neurons"]
        off = _BIAS_OFFSETS[li]
        # MXU: bf16 operands (cast in-kernel), f32 accumulate.
        h = jnp.dot(h.astype(jnp.bfloat16), w_refs[li][...],
                    preferred_element_type=jnp.float32)
        # f32 epilogue (safe on v5e: no bf16 VPU/EUP path).
        h = h + b_all[:, off:off + n]
        is_last = li == _NUM_LAYERS - 1
        if (not is_last) or PROBLEM_TYPE == "regression":
            h = _apply_activation(h, conf.get("activation", "relu"),
                                  conf.get("alpha", 0.01))

    # problem_type == 'regression' -> identity head.
    # TODO(synk): binary/multiclass problem types would apply a sigmoid/softmax
    # epilogue here.
    o_ref[...] = h.astype(o_ref.dtype)


# ----------------------------------------------------------------------------
# Tile selection: big tiles, >=2 even tiles when the batch splits cleanly
# (v7x megacore), and no wrapper-side padding for typical batch sizes.
# ----------------------------------------------------------------------------
def _round_up(x, m):
    return ((x + m - 1) // m) * m


def _choose_tile_b(batch, max_tile=MAX_TILE_B):
    padded8 = _round_up(max(batch, 1), 8)
    half = padded8 // 2
    if padded8 % 16 == 0 and half <= max_tile:
        return half                    # exactly 2 tiles, no extra padding
    if padded8 <= max_tile:
        return padded8                 # one tile, no extra padding
    return max_tile                    # large batch: cap tile size


# ----------------------------------------------------------------------------
# Wrapper: batch-tiled pallas_call with VMEM-resident weights
# ----------------------------------------------------------------------------
def mlp_forward(x, packed):
    """x: [batch, INPUT_DIM] f32.
    packed: (ws, b_all) from pack_params() — ws are bf16 (in, out) weights,
    b_all is the (1, 112) f32 concatenation of all biases.
    Returns [batch, OUT_DIM] f32."""
    ws, b_all = packed
    batch, in_dim = x.shape
    out_dim = ws[-1].shape[1]

    tile_b = _choose_tile_b(batch)
    n_tiles = (batch + tile_b - 1) // tile_b
    padded_batch = n_tiles * tile_b
    if padded_batch != batch:
        # Padded rows produce garbage outputs that are sliced off below; with a
        # nonzero final bias they would be nonzero, which is fine since they
        # never escape the wrapper.
        x = jnp.pad(x, ((0, padded_batch - batch), (0, 0)))

    _const_map = lambda i: (0, 0)      # weights/biases: DMA'd once, VMEM-resident

    in_specs = [pl.BlockSpec((tile_b, in_dim), lambda i: (i, 0))]
    flat_args = [x]
    for w in ws:
        in_specs.append(pl.BlockSpec(w.shape, _const_map))
        flat_args.append(w)
    in_specs.append(pl.BlockSpec(b_all.shape, _const_map))
    flat_args.append(b_all)

    out = pl.pallas_call(
        mlp_kernel,
        out_shape=jax.ShapeDtypeStruct((padded_batch, out_dim), jnp.float32),
        grid=(n_tiles,),
        in_specs=in_specs,
        out_specs=pl.BlockSpec((tile_b, out_dim), lambda i: (i, 0)),
        compiler_params=pltpu.CompilerParams(
            dimension_semantics=("parallel",),   # megacore sharding on v7x
        ),
    )(*flat_args)

    if padded_batch != batch:
        out = out[:batch]
    return out


# ----------------------------------------------------------------------------
# Parameter init (mirrors _init_weights: he_normal, bias = 0) and packing
# ----------------------------------------------------------------------------
def init_params(key):
    """Returns a list of (W[in, out] f32, b[out] f32) — the f32 'master' params."""
    params = []
    in_dim = INPUT_DIM
    for conf in LAYER_CONFIG:
        out_dim = conf["neurons"]
        key, sub = jax.random.split(key)
        # kaiming_normal_(nonlinearity='relu'): std = sqrt(2 / fan_in)
        std = math.sqrt(2.0 / in_dim)
        w_torch = std * jax.random.normal(sub, (out_dim, in_dim), dtype=jnp.float32)
        params.append((w_torch.T, jnp.zeros((out_dim,), dtype=jnp.float32)))
        in_dim = out_dim
    return params


def pack_params(params):
    """One-time packing for the kernel: bf16 weights + concatenated f32 biases."""
    ws = [w.astype(jnp.bfloat16) for (w, _) in params]
    b_all = jnp.concatenate([b for (_, b) in params]).reshape(1, _BIAS_TOTAL)
    return ws, b_all.astype(jnp.float32)


# ----------------------------------------------------------------------------
# Pure-JAX references (PyTorch forward semantics)
# ----------------------------------------------------------------------------
def reference_forward(x, params, *, cast_bf16=False):
    h = x
    for li, ((w, b), conf) in enumerate(zip(params, LAYER_CONFIG)):
        if cast_bf16:
            h = jnp.dot(h.astype(jnp.bfloat16), w.astype(jnp.bfloat16),
                        preferred_element_type=jnp.float32) + b
        else:
            h = h @ w + b
        is_last = li == _NUM_LAYERS - 1
        if (not is_last) or PROBLEM_TYPE == "regression":
            h = _apply_activation(h, conf.get("activation", "relu"),
                                  conf.get("alpha", 0.01))
    return h  # regression head = identity


if __name__ == "__main__":
    key = jax.random.PRNGKey(0)
    key, k_x = jax.random.split(key)

    batch = 256                         # -> 2 tiles of 128 (no wrapper padding)
    x = jax.random.normal(k_x, (batch, INPUT_DIM), dtype=jnp.float32)
    params = init_params(key)
    packed = pack_params(params)

    out = jax.block_until_ready(mlp_forward(x, packed))
    assert out.shape == (batch, OUT_DIM)

    # Tight check vs a reference that mirrors the kernel's bf16 MXU operands.
    ref_bf16 = reference_forward(x, params, cast_bf16=True)
    assert jnp.allclose(out, ref_bf16, atol=1e-4, rtol=1e-4), \
        "mismatch vs bf16-mirrored JAX reference"

    # Loose check vs the pure-f32 PyTorch-semantics reference.
    ref_f32 = reference_forward(x, params, cast_bf16=False)
    assert jnp.allclose(out, ref_f32, atol=5e-2, rtol=5e-2), \
        "mismatch vs f32 JAX reference"

    # Exercise the ragged-batch (single-tile, padded) path as well.
    x_small = x[:37]
    out_small = jax.block_until_ready(mlp_forward(x_small, packed))
    assert out_small.shape == (37, OUT_DIM)
    assert jnp.allclose(out_small,
                        reference_forward(x_small, params, cast_bf16=True),
                        atol=1e-4, rtol=1e-4), "mismatch on padded-batch path"

    print("KERNEL_OK")
</pallas_src>

<mosaic_0001>
module attributes {stable_mosaic.version = 11 : i64} {
  func.func @mlp_kernel(%arg0: i32, %arg1: memref<128x32xf32, #tpu.memory_space<vmem>>, %arg2: memref<32x64xbf16, #tpu.memory_space<vmem>>, %arg3: memref<64x32xbf16, #tpu.memory_space<vmem>>, %arg4: memref<32x16xbf16, #tpu.memory_space<vmem>>, %arg5: memref<1x112xf32, #tpu.memory_space<vmem>>, %arg6: memref<128x16xf32, #tpu.memory_space<vmem>>) attributes {dimension_semantics = [#tpu.dimension_semantics<parallel>], iteration_bounds = array<i64: 2>, scalar_prefetch = 0 : i64, scratch_operands = 0 : i64, tpu.core_type = #tpu.core_type<tc>, window_params = [{transform_indices = @transform_0, window_bounds = array<i64: 128, 32>}, {pipeline_mode = #tpu.pipeline_mode<synchronous>, transform_indices = @transform_1, window_bounds = array<i64: 32, 64>}, {pipeline_mode = #tpu.pipeline_mode<synchronous>, transform_indices = @transform_2, window_bounds = array<i64: 64, 32>}, {pipeline_mode = #tpu.pipeline_mode<synchronous>, transform_indices = @transform_3, window_bounds = array<i64: 32, 16>}, {pipeline_mode = #tpu.pipeline_mode<synchronous>, transform_indices = @transform_4, window_bounds = array<i64: 1, 112>}, {transform_indices = @transform_5, window_bounds = array<i64: 128, 16>}]} {
    %c0 = arith.constant 0 : index
    %c0_0 = arith.constant 0 : index
    %0 = vector.load %arg5[%c0, %c0_0] : memref<1x112xf32, #tpu.memory_space<vmem>>, vector<1x112xf32>
    %c0_1 = arith.constant 0 : index
    %c0_2 = arith.constant 0 : index
    %1 = vector.load %arg1[%c0_1, %c0_2] : memref<128x32xf32, #tpu.memory_space<vmem>>, vector<128x32xf32>
    %2 = arith.truncf %1 : vector<128x32xf32> to vector<128x32xbf16>
    %c0_3 = arith.constant 0 : index
    %c0_4 = arith.constant 0 : index
    %3 = vector.load %arg2[%c0_3, %c0_4] : memref<32x64xbf16, #tpu.memory_space<vmem>>, vector<32x64xbf16>
    %cst = arith.constant dense<0.000000e+00> : vector<128x64xf32>
    %4 = tpu.matmul %2, %3, %cst {dimension_numbers = #tpu.dot_dimension_numbers<[1], [0], [0], [1], [0, 0, 1, 1], [], []>} : vector<128x32xbf16>, vector<32x64xbf16>, vector<128x64xf32> -> vector<128x64xf32>
    %5 = vector.extract_strided_slice %0 {offsets = [0, 0], sizes = [1, 64], strides = [1, 1]} : vector<1x112xf32> to vector<1x64xf32>
    %6 = vector.broadcast %5 : vector<1x64xf32> to vector<128x64xf32>
    %7 = arith.addf %4, %6 : vector<128x64xf32>
    %cst_5 = arith.constant 0.000000e+00 : f32
    %8 = vector.broadcast %cst_5 : f32 to vector<128x64xf32>
    %9 = arith.maximumf %7, %8 : vector<128x64xf32>
    %10 = arith.truncf %9 : vector<128x64xf32> to vector<128x64xbf16>
    %c0_6 = arith.constant 0 : index
    %c0_7 = arith.constant 0 : index
    %11 = vector.load %arg3[%c0_6, %c0_7] : memref<64x32xbf16, #tpu.memory_space<vmem>>, vector<64x32xbf16>
    %cst_8 = arith.constant dense<0.000000e+00> : vector<128x32xf32>
    %12 = tpu.matmul %10, %11, %cst_8 {dimension_numbers = #tpu.dot_dimension_numbers<[1], [0], [0], [1], [0, 0, 1, 1], [], []>} : vector<128x64xbf16>, vector<64x32xbf16>, vector<128x32xf32> -> vector<128x32xf32>
    %13 = vector.extract_strided_slice %0 {offsets = [0, 64], sizes = [1, 32], strides = [1, 1]} : vector<1x112xf32> to vector<1x32xf32>
    %14 = vector.broadcast %13 : vector<1x32xf32> to vector<128x32xf32>
    %15 = arith.addf %12, %14 : vector<128x32xf32>
    %16 = math.tanh %15 : vector<128x32xf32>
    %17 = arith.truncf %16 : vector<128x32xf32> to vector<128x32xbf16>
    %c0_9 = arith.constant 0 : index
    %c0_10 = arith.constant 0 : index
    %18 = vector.load %arg4[%c0_9, %c0_10] : memref<32x16xbf16, #tpu.memory_space<vmem>>, vector<32x16xbf16>
    %cst_11 = arith.constant dense<0.000000e+00> : vector<128x16xf32>
    %19 = tpu.matmul %17, %18, %cst_11 {dimension_numbers = #tpu.dot_dimension_numbers<[1], [0], [0], [1], [0, 0, 1, 1], [], []>} : vector<128x32xbf16>, vector<32x16xbf16>, vector<128x16xf32> -> vector<128x16xf32>
    %20 = vector.extract_strided_slice %0 {offsets = [0, 96], sizes = [1, 16], strides = [1, 1]} : vector<1x112xf32> to vector<1x16xf32>
    %21 = vector.broadcast %20 : vector<1x16xf32> to vector<128x16xf32>
    %22 = arith.addf %19, %21 : vector<128x16xf32>
    %cst_12 = arith.constant 0.000000e+00 : f32
    %23 = vector.broadcast %cst_12 : f32 to vector<128x16xf32>
    %24 = arith.maximumf %22, %23 : vector<128x16xf32>
    %c0_13 = arith.constant 0 : index
    %c0_14 = arith.constant 0 : index
    %25 = vector.load %arg6[%c0_13, %c0_14] : memref<128x16xf32, #tpu.memory_space<vmem>>, vector<128x16xf32>
    tpu.vector_store %arg6[%c0_13, %c0_14], %24 {strides = array<i32>} : memref<128x16xf32, #tpu.memory_space<vmem>>, vector<128x16xf32>,
    return
  }
  func.func @transform_0(%arg0: i32) -> (i32, i32) {
    %c0_i32 = arith.constant 0 : i32
    %c0_i32_0 = arith.constant 0 : i32
    return %arg0, %c0_i32 : i32, i32
  }
  func.func @transform_1(%arg0: i32) -> (i32, i32) {
    %c0_i32 = arith.constant 0 : i32
    %c0_i32_0 = arith.constant 0 : i32
    %c0_i32_1 = arith.constant 0 : i32
    return %c0_i32, %c0_i32_0 : i32, i32
  }
  func.func @transform_2(%arg0: i32) -> (i32, i32) {
    %c0_i32 = arith.constant 0 : i32
    %c0_i32_0 = arith.constant 0 : i32
    %c0_i32_1 = arith.constant 0 : i32
    return %c0_i32, %c0_i32_0 : i32, i32
  }
  func.func @transform_3(%arg0: i32) -> (i32, i32) {
    %c0_i32 = arith.constant 0 : i32
    %c0_i32_0 = arith.constant 0 : i32
    %c0_i32_1 = arith.constant 0 : i32
    return %c0_i32, %c0_i32_0 : i32, i32
  }
  func.func @transform_4(%arg0: i32) -> (i32, i32) {
    %c0_i32 = arith.constant 0 : i32
    %c0_i32_0 = arith.constant 0 : i32
    %c0_i32_1 = arith.constant 0 : i32
    return %c0_i32, %c0_i32_0 : i32, i32
  }
  func.func @transform_5(%arg0: i32) -> (i32, i32) {
    %c0_i32 = arith.constant 0 : i32
    %c0_i32_0 = arith.constant 0 : i32
    return %arg0, %c0_i32 : i32, i32
  }
}

</mosaic_0001>

<llo_original>
// kernel: tpu_custom_call.1
$region0: #{tpu_custom_call.1}
  #allocation0 [shape = 'u32[]', space=smem, size = 0x4, offset = 0x4, fixed_abs, tag = 'smem constant byte address 0x4 - core index']
  #allocation1 [shape = 'u32[144,128]{1,0:T(1,128)}', space=vmem, size = 0x12000, scoped, tag = 'internal scratch']
  %s0 = inlined_call_operand.vmem [shape: f32[256,32], index: 0, kind: input, shape index: {}]
  %s1 = inlined_call_operand.vmem [shape: bf16[32,64], index: 1, kind: input, shape index: {}]
  %s2 = inlined_call_operand.vmem [shape: bf16[64,32], index: 2, kind: input, shape index: {}]
  %s3 = inlined_call_operand.vmem [shape: bf16[32,16], index: 3, kind: input, shape index: {}]
  %s4 = inlined_call_operand.vmem [shape: f32[1,112], index: 4, kind: input, shape index: {}]
  %s5 = inlined_call_operand.vmem [shape: f32[256,16], index: 5, kind: output, shape index: {}]
  %s6 = sld [smem:[#allocation0]]
  $region53: #{tpu_custom_call.1} parent=0
    _
  %s8 = ssub.s32 1, %s6
  %s9 = scalar_select 0, %s8, %s6
  loop: start=0, step=1, limit=4
  $region2: #{tpu_custom_call.1} parent=0 // loop_pre_header
    _
  $region3: #{tpu_custom_call.1} parent=0 // loop_header
    %s11 = sphi 0, %s15
    %p12 = scmp.ge.s32.totalorder %s11, 4
    %s21 = sphi 0, %s23
    %s24 = sphi 0, %s21
    %s25 = sphi 0, %s24
    %s41 = sphi 0, %s25
    %s45 = sphi 0, %s45
    %s47 = sphi 0, %s45
    %s48 = sphi 0, %s47
    %s62 = sphi 0, %s48
    %s66 = sphi 0, %s66
    %s68 = sphi 0, %s66
    %s69 = sphi 0, %s68
    %s83 = sphi 0, %s69
    %s87 = sphi 0, %s87
    %s89 = sphi 0, %s87
    %s90 = sphi 0, %s89
    %s104 = sphi 0, %s90
    %s108 = sphi 0, %s108
    %s110 = sphi 0, %s108
    %s111 = sphi 0, %s110
    %s125 = sphi 0, %s111
    %s131 = sphi 0, %s133
    %s134 = sphi 0, %s131
    %s135 = sphi 0, %s134
    %s151 = sphi 0, %s135
  $region4: #{tpu_custom_call.1} parent=0 // loop_header_branch
    %14 = sbr.rel (%p12) target = $region8
  $region5: #{tpu_custom_call.1} parent=0 // loop_body
    %s16 = ssub.s32 %s11, 1
    %s17 = ssub.s32 %s11, 2
    %s18 = sadd.s32 %s11, 1
    %s19 = ssub.s32 %s11, %s18
    %p20 = scmp.eq.s32.totalorder %s19, 0
    %s22 = sadd.s32 %s21, 1
    %s23 = scalar_select %p20, %s21, %s22
    %p26 = pneg %p20
    %p27 = scmp.eq.s32.totalorder %s11, 1
    %p28 = por %p26, %p27
    %p29 = scmp.ne.s32.totalorder %s21, %s24
    %p30 = scmp.eq.s32.totalorder %s11, 0
    %p31 = por %p29, %p30
    %p32 = scmp.ne.s32.totalorder %s21, %s24
    %p33 = scmp.eq.s32.totalorder %s16, 1
    %p34 = por %p32, %p33
    %p35 = scmp.ne.s32.totalorder %s24, %s25
    %p36 = scmp.eq.s32.totalorder %s16, 0
    %p37 = por %p35, %p36
    %p38 = scmp.ne.s32.totalorder %s24, %s25
    %p39 = scmp.eq.s32.totalorder %s17, 1
    %p40 = por %p38, %p39
    %p42 = scmp.ne.s32.totalorder %s25, %s41
    %p43 = scmp.eq.s32.totalorder %s17, 0
    %p44 = por %p42, %p43
    %s46 = sadd.s32 %s45, 1
    %p49 = scmp.eq.s32.totalorder %s11, 1
    %p50 = scmp.ne.s32.totalorder %s45, %s47
    %p51 = scmp.eq.s32.totalorder %s11, 0
    %p52 = por %p50, %p51
    %p53 = scmp.ne.s32.totalorder %s45, %s47
    %p54 = scmp.eq.s32.totalorder %s16, 1
    %p55 = por %p53, %p54
    %p56 = scmp.ne.s32.totalorder %s47, %s48
    %p57 = scmp.eq.s32.totalorder %s16, 0
    %p58 = por %p56, %p57
    %p59 = scmp.ne.s32.totalorder %s47, %s48
    %p60 = scmp.eq.s32.totalorder %s17, 1
    %p61 = por %p59, %p60
    %p63 = scmp.ne.s32.totalorder %s48, %s62
    %p64 = scmp.eq.s32.totalorder %s17, 0
    %p65 = por %p63, %p64
    %s67 = sadd.s32 %s66, 1
    %p70 = scmp.eq.s32.totalorder %s11, 1
    %p71 = scmp.ne.s32.totalorder %s66, %s68
    %p72 = scmp.eq.s32.totalorder %s11, 0
    %p73 = por %p71, %p72
    %p74 = scmp.ne.s32.totalorder %s66, %s68
    %p75 = scmp.eq.s32.totalorder %s16, 1
    %p76 = por %p74, %p75
    %p77 = scmp.ne.s32.totalorder %s68, %s69
    %p78 = scmp.eq.s32.totalorder %s16, 0
    %p79 = por %p77, %p78
    %p80 = scmp.ne.s32.totalorder %s68, %s69
    %p81 = scmp.eq.s32.totalorder %s17, 1
    %p82 = por %p80, %p81
    %p84 = scmp.ne.s32.totalorder %s69, %s83
    %p85 = scmp.eq.s32.totalorder %s17, 0
    %p86 = por %p84, %p85
    %s88 = sadd.s32 %s87, 1
    %p91 = scmp.eq.s32.totalorder %s11, 1
    %p92 = scmp.ne.s32.totalorder %s87, %s89
    %p93 = scmp.eq.s32.totalorder %s11, 0
    %p94 = por %p92, %p93
    %p95 = scmp.ne.s32.totalorder %s87, %s89
    %p96 = scmp.eq.s32.totalorder %s16, 1
    %p97 = por %p95, %p96
    %p98 = scmp.ne.s32.totalorder %s89, %s90
    %p99 = scmp.eq.s32.totalorder %s16, 0
    %p100 = por %p98, %p99
    %p101 = scmp.ne.s32.totalorder %s89, %s90
    %p102 = scmp.eq.s32.totalorder %s17, 1
    %p103 = por %p101, %p102
    %p105 = scmp.ne.s32.totalorder %s90, %s104
    %p106 = scmp.eq.s32.totalorder %s17, 0
    %p107 = por %p105, %p106
    %s109 = sadd.s32 %s108, 1
    %p112 = scmp.eq.s32.totalorder %s11, 1
    %p113 = scmp.ne.s32.totalorder %s108, %s110
    %p114 = scmp.eq.s32.totalorder %s11, 0
    %p115 = por %p113, %p114
    %p116 = scmp.ne.s32.totalorder %s108, %s110
    %p117 = scmp.eq.s32.totalorder %s16, 1
    %p118 = por %p116, %p117
    %p119 = scmp.ne.s32.totalorder %s110, %s111
    %p120 = scmp.eq.s32.totalorder %s16, 0
    %p121 = por %p119, %p120
    %p122 = scmp.ne.s32.totalorder %s110, %s111
    %p123 = scmp.eq.s32.totalorder %s17, 1
    %p124 = por %p122, %p123
    %p126 = scmp.ne.s32.totalorder %s111, %s125
    %p127 = scmp.eq.s32.totalorder %s17, 0
    %p128 = por %p126, %p127
    %s129 = ssub.s32 %s11, %s18
    %p130 = scmp.eq.s32.totalorder %s129, 0
    %s132 = sadd.s32 %s131, 1
    %s133 = scalar_select %p130, %s131, %s132
    %p136 = pneg %p130
    %p137 = scmp.eq.s32.totalorder %s11, 1
    %p138 = por %p136, %p137
    %p139 = scmp.ne.s32.totalorder %s131, %s134
    %p140 = scmp.eq.s32.totalorder %s11, 0
    %p141 = por %p139, %p140
    %p142 = scmp.ne.s32.totalorder %s131, %s134
    %p143 = scmp.eq.s32.totalorder %s16, 1
    %p144 = por %p142, %p143
    %p145 = scmp.ne.s32.totalorder %s134, %s135
    %p146 = scmp.eq.s32.totalorder %s16, 0
    %p147 = por %p145, %p146
    %p148 = scmp.ne.s32.totalorder %s134, %s135
    %p149 = scmp.eq.s32.totalorder %s17, 1
    %p150 = por %p148, %p149
    %p152 = scmp.ne.s32.totalorder %s135, %s151
    %p153 = scmp.eq.s32.totalorder %s17, 0
    %p154 = por %p152, %p153
    %p155 = scmp.le.s32.totalorder 1, %s11
    %p156 = scmp.lt.s32.totalorder %s11, 3
    %p157 = pnand %p155, %p156
    %p158 = pneg %p157
    // Predicated region
    $region9: #{tpu_custom_call.1} parent=5 // pred_check
      _
    $region10: #{tpu_custom_call.1} parent=5 // pred_check_branch
      %160 = sbr.rel (%p157) target = $region12
    $region11: #{tpu_custom_call.1} parent=5 // pred_region
      %s161 = ssub.s32 %s11, 1
      // Predicated region
      $region13: #{tpu_custom_call.1} parent=11 // pred_check
        %p162 = pneg %p58
      $region14: #{tpu_custom_call.1} parent=11 // pred_check_branch
        %164 = sbr.rel (%p162) target = $region16
      $region15: #{tpu_custom_call.1} parent=11 // pred_region
        _
      $region16: #{tpu_custom_call.1} parent=11 // pred_fallthru
        _
      // Predicated region
      $region17: #{tpu_custom_call.1} parent=11 // pred_check
        %p165 = pneg %p79
      $region18: #{tpu_custom_call.1} parent=11 // pred_check_branch
        %167 = sbr.rel (%p165) target = $region20
      $region19: #{tpu_custom_call.1} parent=11 // pred_region
        _
      $region20: #{tpu_custom_call.1} parent=11 // pred_fallthru
        _
      // Predicated region
      $region21: #{tpu_custom_call.1} parent=11 // pred_check
        %p168 = pneg %p100
      $region22: #{tpu_custom_call.1} parent=11 // pred_check_branch
        %170 = sbr.rel (%p168) target = $region24
      $region23: #{tpu_custom_call.1} parent=11 // pred_region
        _
      $region24: #{tpu_custom_call.1} parent=11 // pred_fallthru
        _
      // Predicated region
      $region25: #{tpu_custom_call.1} parent=11 // pred_check
        %p171 = pneg %p121
      $region26: #{tpu_custom_call.1} parent=11 // pred_check_branch
        %173 = sbr.rel (%p171) target = $region28
      $region27: #{tpu_custom_call.1} parent=11 // pred_region
        _
      $region28: #{tpu_custom_call.1} parent=11 // pred_fallthru
        _
    $region12: #{tpu_custom_call.1} parent=5 // pred_fallthru
      _
    %p174 = scmp.lt.s32.totalorder %s11, 2
    // Predicated region
    $region29: #{tpu_custom_call.1} parent=5 // pred_check
      %p175 = pneg %p174
    $region30: #{tpu_custom_call.1} parent=5 // pred_check_branch
      %177 = sbr.rel (%p175) target = $region32
    $region31: #{tpu_custom_call.1} parent=5 // pred_region
      // Predicated region
      $region33: #{tpu_custom_call.1} parent=31 // pred_check
        %p178 = pneg %p31
      $region34: #{tpu_custom_call.1} parent=31 // pred_check_branch
        %180 = sbr.rel (%p178) target = $region36
      $region35: #{tpu_custom_call.1} parent=31 // pred_region
        %s181 = smul.u32 16, %s11
        %p182 = scmp.lt.s32.totalorder %s181, 31
        %s183 = scalar_select %p182, %s181, 31
        %s184 = smul.addr %s183, 8
        %s185 = scalar_lea.vmem %s0, %s184
        %s186 = smul.u32 16, %s11
      $region36: #{tpu_custom_call.1} parent=31 // pred_fallthru
        _
    $region32: #{tpu_custom_call.1} parent=5 // pred_fallthru
      _
    %p187 = scmp.le.s32.totalorder 1, %s11
    %p188 = scmp.lt.s32.totalorder %s11, 3
    %p189 = pnand %p187, %p188
    %p190 = pneg %p189
    // Predicated region
    $region37: #{tpu_custom_call.1} parent=5 // pred_check
      _
    $region38: #{tpu_custom_call.1} parent=5 // pred_check_branch
      %192 = sbr.rel (%p189) target = $region40
    $region39: #{tpu_custom_call.1} parent=5 // pred_region
      %s193 = ssub.s32 %s11, 1
      %s194 = smul.u32 16, %s16
      %p195 = scmp.lt.s32.totalorder %s194, 31
      %s196 = scalar_select %p195, %s194, 31
      %s197 = smul.addr %s196, 8
      %s198 = scalar_lea.vmem %s0, %s197
      %p199 = pneg %p37
      %p200 = pneg %p34
      %p201 = pneg %p58
      %p202 = pneg %p55
      %p203 = pneg %p79
      %p204 = pneg %p76
      %p205 = pneg %p100
      %p206 = pneg %p97
      %p207 = pneg %p121
      %p208 = pneg %p118
      %p209 = pneg %p147
      %p210 = pneg %p144
      %s211 = smul.u32 16, %s16
      %p212 = scmp.lt.s32.totalorder %s211, 31
      %s213 = scalar_select %p212, %s211, 31
      %s214 = smul.addr %s213, 8
      %s215 = scalar_lea.vmem %s5, %s214
      %s216 = smul.u32 16, %s16
      %p217 = scmp.lt.s32.totalorder %s216, 31
      %s218 = scalar_select %p217, %s216, 31
      %s219 = smul.addr %s218, 8
      %s220 = scalar_lea.vmem %s0, %s219
      %s221 = smul.u32 16, %s16
      %s222 = smul.u32 16, %s16
      %p223 = scmp.lt.s32.totalorder %s222, 31
      %s224 = scalar_select %p223, %s222, 31
      %s225 = smul.addr %s224, 8
      %s226 = scalar_lea.vmem %s5, %s225
      %s227 = smul.u32 16, %s16
      %v229 = vld [vmem:[%s4] sm:$0x1]
      %v230 = vld [vmem:[%s220] sm:$0xff]
      %v231 = vld [vmem:[%s220 + $0x8] sm:$0xff]
      %v232 = vld [vmem:[%s220 + $0x10] sm:$0xff]
      %v233 = vld [vmem:[%s220 + $0x18] sm:$0xff]
      %v234 = vld [vmem:[%s220 + $0x20] sm:$0xff]
      %v235 = vld [vmem:[%s220 + $0x28] sm:$0xff]
      %v236 = vld [vmem:[%s220 + $0x30] sm:$0xff]
      %v237 = vld [vmem:[%s220 + $0x38] sm:$0xff]
      %v238 = vld [vmem:[%s220 + $0x40] sm:$0xff]
      %v239 = vld [vmem:[%s220 + $0x48] sm:$0xff]
      %v240 = vld [vmem:[%s220 + $0x50] sm:$0xff]
      %v241 = vld [vmem:[%s220 + $0x58] sm:$0xff]
      %v242 = vld [vmem:[%s220 + $0x60] sm:$0xff]
      %v243 = vld [vmem:[%s220 + $0x68] sm:$0xff]
      %v244 = vld [vmem:[%s220 + $0x70] sm:$0xff]
      %v245 = vld [vmem:[%s220 + $0x78] sm:$0xff]
      %v246 = vpack.c.bf16 %v231, %v230
      %v247 = vpack.c.bf16 %v233, %v232
      %v248 = vpack.c.bf16 %v235, %v234
      %v249 = vpack.c.bf16 %v237, %v236
      %v250 = vpack.c.bf16 %v239, %v238
      %v251 = vpack.c.bf16 %v241, %v240
      %v252 = vpack.c.bf16 %v243, %v242
      %v253 = vpack.c.bf16 %v245, %v244
      %v254 = vld [vmem:[%s1] sm:$0xf]
      %v255 = vld [vmem:[%s1 + $0x4] sm:$0xf]
      %v256 = vld [vmem:[%s1 + $0x8] sm:$0xf]
      %v257 = vld [vmem:[%s1 + $0xc] sm:$0xf]
      %v259 = vlaneseq
      %v260 = vshrl.u32 %v259, 7
      %v261 = vsub.s32 0, %v260
      %v262 = vrot.slane %v229, %v261
      %v268 = vunpack.c.l.b16 %v254
      %v269 = vunpack.c.l.b16 %v255
      %v270 = vunpack.c.l.b16 %v256
      %v271 = vunpack.c.l.b16 %v257
      %v272 = vpack.c.b16 %v269, %v268
      %v273 = vpack.c.b16 %v271, %v270
      %vm276 = vcmask 261120
      %v278 = vsel %vm276, %v246, 0
      %v281 = vsel %vm276, %v247, 0
      %v284 = vsel %vm276, %v248, 0
      %v287 = vsel %vm276, %v249, 0
      %v290 = vsel %vm276, %v250, 0
      %v293 = vsel %vm276, %v251, 0
      %v296 = vsel %vm276, %v252, 0
      %v299 = vsel %vm276, %v253, 0
      %301 = vmatprep.subr.bf16.mxu0 0
      %302 = vmatpush1.bf16.msra.mxu0 %v272
      %303 = vmatprep.subr.bf16.mxu0 0
      %304 = vmatpush1.bf16.msra.mxu0 %v273
      %305 = vmatprep.subr.bf16.mxu0 0
      %306 = vmatpush1.bf16.msra.mxu0 0
      %307 = vmatprep.subr.bf16.mxu0 0
      %308 = vmatpush1.bf16.msra.mxu0 0
      %309 = vmatprep.subr.bf16.mxu0 0
      %310 = vmatpush1.bf16.msra.mxu0 0
      %311 = vmatprep.subr.bf16.mxu0 0
      %312 = vmatpush1.bf16.msra.mxu0 0
      %313 = vmatprep.subr.bf16.mxu0 0
      %314 = vmatpush1.bf16.msra.mxu0 0
      %315 = vmatprep.subr.bf16.mxu0 0
      %316 = vmatpush1.bf16.msra.mxu0 0
      %317 = vmatprep.subr.bf16.mxu0 0
      %318 = vmatpush1.bf16.msra.mxu0 0
      %319 = vmatprep.subr.bf16.mxu0 0
      %320 = vmatpush1.bf16.msra.mxu0 0
      %321 = vmatprep.subr.bf16.mxu0 0
      %322 = vmatpush1.bf16.msra.mxu0 0
      %323 = vmatprep.subr.bf16.mxu0 0
      %324 = vmatpush1.bf16.msra.mxu0 0
      %325 = vmatprep.subr.bf16.mxu0 0
      %326 = vmatpush1.bf16.msra.mxu0 0
      %327 = vmatprep.subr.bf16.mxu0 0
      %328 = vmatpush1.bf16.msra.mxu0 0
      %329 = vmatprep.subr.bf16.mxu0 0
      %330 = vmatpush1.bf16.msra.mxu0 0
      %331 = vmatprep.subr.bf16.mxu0 0
      %332 = vmatpush1.bf16.msra.mxu0 0
      %333 = vmatprep.mubr.bf16.mxu0 0
      %334 = vmatmul.mubr.bf16.gmra.mrb[0].mxu0 %v278
      %v335 = vpop.f32.mrb[0].mxu0
      %v336 = vadd.f32 %v262, %v335
      %v337 = vpop.f32.mrb[0].mxu0
      %v338 = vpop.f32.mrb[0].mxu0
      %v339 = vadd.f32 %v262, %v338
      %v340 = vpop.f32.mrb[0].mxu0
      %341 = vmatprep.mubr.bf16.mxu0 0
      %342 = vmatmul.mubr.bf16.gmra.mrb[0].mxu0 %v281
      %v343 = vpop.f32.mrb[0].mxu0
      %v344 = vadd.f32 %v262, %v343
      %v345 = vpop.f32.mrb[0].mxu0
      %v346 = vpop.f32.mrb[0].mxu0
      %v347 = vadd.f32 %v262, %v346
      %v348 = vpop.f32.mrb[0].mxu0
      %349 = vmatprep.mubr.bf16.mxu0 0
      %350 = vmatmul.mubr.bf16.gmra.mrb[0].mxu0 %v284
      %v351 = vpop.f32.mrb[0].mxu0
      %v352 = vadd.f32 %v262, %v351
      %v353 = vpop.f32.mrb[0].mxu0
      %v354 = vpop.f32.mrb[0].mxu0
      %v355 = vadd.f32 %v262, %v354
      %v356 = vpop.f32.mrb[0].mxu0
      %357 = vmatprep.mubr.bf16.mxu0 0
      %358 = vmatmul.mubr.bf16.gmra.mrb[0].mxu0 %v287
      %v359 = vpop.f32.mrb[0].mxu0
      %v360 = vadd.f32 %v262, %v359
      %v361 = vpop.f32.mrb[0].mxu0
      %v362 = vpop.f32.mrb[0].mxu0
      %v363 = vadd.f32 %v262, %v362
      %v364 = vpop.f32.mrb[0].mxu0
      %365 = vmatprep.mubr.bf16.mxu0 0
      %366 = vmatmul.mubr.bf16.gmra.mrb[0].mxu0 %v290
      %v367 = vpop.f32.mrb[0].mxu0
      %v368 = vadd.f32 %v262, %v367
      %v369 = vpop.f32.mrb[0].mxu0
      %v370 = vpop.f32.mrb[0].mxu0
      %v371 = vadd.f32 %v262, %v370
      %v372 = vpop.f32.mrb[0].mxu0
      %373 = vmatprep.mubr.bf16.mxu0 0
      %374 = vmatmul.mubr.bf16.gmra.mrb[0].mxu0 %v293
      %v375 = vpop.f32.mrb[0].mxu0
      %v376 = vadd.f32 %v262, %v375
      %v377 = vpop.f32.mrb[0].mxu0
      %v378 = vpop.f32.mrb[0].mxu0
      %v379 = vadd.f32 %v262, %v378
      %v380 = vpop.f32.mrb[0].mxu0
      %381 = vmatprep.mubr.bf16.mxu0 0
      %382 = vmatmul.mubr.bf16.gmra.mrb[0].mxu0 %v296
      %v383 = vpop.f32.mrb[0].mxu0
      %v384 = vadd.f32 %v262, %v383
      %v385 = vpop.f32.mrb[0].mxu0
      %v386 = vpop.f32.mrb[0].mxu0
      %v387 = vadd.f32 %v262, %v386
      %v388 = vpop.f32.mrb[0].mxu0
      %389 = vmatprep.mubr.bf16.mxu0 0
      %390 = vmatmul.mubr.bf16.gmra.mrb[0].mxu0 %v299
      %v391 = vpop.f32.mrb[0].mxu0
      %v392 = vadd.f32 %v262, %v391
      %v393 = vpop.f32.mrb[0].mxu0
      %v394 = vpop.f32.mrb[0].mxu0
      %v395 = vadd.f32 %v262, %v394
      %v396 = vpop.f32.mrb[0].mxu0
      %397 = vdwg.mxu0
      %v398 = vmax.f32 %v336, 0.0
      %v399 = vmax.f32 %v339, 0.0
      %v400 = vmax.f32 %v344, 0.0
      %v401 = vmax.f32 %v347, 0.0
      %v402 = vmax.f32 %v352, 0.0
      %v403 = vmax.f32 %v355, 0.0
      %v404 = vmax.f32 %v360, 0.0
      %v405 = vmax.f32 %v363, 0.0
      %v406 = vmax.f32 %v368, 0.0
      %v407 = vmax.f32 %v371, 0.0
      %v408 = vmax.f32 %v376, 0.0
      %v409 = vmax.f32 %v379, 0.0
      %v410 = vmax.f32 %v384, 0.0
      %v411 = vmax.f32 %v387, 0.0
      %v412 = vmax.f32 %v392, 0.0
      %v413 = vmax.f32 %v395, 0.0
      %v414 = vpack.c.bf16 %v399, %v398
      %v415 = vpack.c.bf16 %v401, %v400
      %v416 = vpack.c.bf16 %v403, %v402
      %v417 = vpack.c.bf16 %v405, %v404
      %v418 = vpack.c.bf16 %v407, %v406
      %v419 = vpack.c.bf16 %v409, %v408
      %v420 = vpack.c.bf16 %v411, %v410
      %v421 = vpack.c.bf16 %v413, %v412
      %v422 = vld [vmem:[%s2] sm:$0xf]
      %v423 = vld [vmem:[%s2 + $0x4] sm:$0xf]
      %v424 = vld [vmem:[%s2 + $0x8] sm:$0xf]
      %v425 = vld [vmem:[%s2 + $0xc] sm:$0xf]
      %v426 = vld [vmem:[%s2 + $0x10] sm:$0xf]
      %v427 = vld [vmem:[%s2 + $0x14] sm:$0xf]
      %v428 = vld [vmem:[%s2 + $0x18] sm:$0xf]
      %v429 = vld [vmem:[%s2 + $0x1c] sm:$0xf]
      %v438 = vunpack.c.l.b16 %v422
      %v439 = vunpack.c.l.b16 %v423
      %v440 = vunpack.c.l.b16 %v424
      %v441 = vunpack.c.l.b16 %v425
      %v442 = vunpack.c.l.b16 %v426
      %v443 = vunpack.c.l.b16 %v427
      %v444 = vunpack.c.l.b16 %v428
      %v445 = vunpack.c.l.b16 %v429
      %v446 = vpack.c.b16 %v439, %v438
      %v447 = vpack.c.b16 %v441, %v440
      %v448 = vpack.c.b16 %v443, %v442
      %v449 = vpack.c.b16 %v445, %v444
      %454 = vrot.lane.b32.xlu0 %v262, 64
      %v455 = vpop.permute.xlu0 %454
      %vm457 = vcmask 523264
      %v459 = vsel %vm457, %v414, 0
      %v462 = vsel %vm457, %v415, 0
      %v465 = vsel %vm457, %v416, 0
      %v468 = vsel %vm457, %v417, 0
      %v471 = vsel %vm457, %v418, 0
      %v474 = vsel %vm457, %v419, 0
      %v477 = vsel %vm457, %v420, 0
      %v480 = vsel %vm457, %v421, 0
      %482 = vmatprep.subr.bf16.mxu0 0
      %483 = vmatpush1.bf16.msra.mxu0 %v446
      %484 = vmatprep.subr.bf16.mxu0 0
      %485 = vmatpush1.bf16.msra.mxu0 %v447
      %486 = vmatprep.subr.bf16.mxu0 0
      %487 = vmatpush1.bf16.msra.mxu0 %v448
      %488 = vmatprep.subr.bf16.mxu0 0
      %489 = vmatpush1.bf16.msra.mxu0 %v449
      %490 = vmatprep.subr.bf16.mxu0 0
      %491 = vmatpush1.bf16.msra.mxu0 0
      %492 = vmatprep.subr.bf16.mxu0 0
      %493 = vmatpush1.bf16.msra.mxu0 0
      %494 = vmatprep.subr.bf16.mxu0 0
      %495 = vmatpush1.bf16.msra.mxu0 0
      %496 = vmatprep.subr.bf16.mxu0 0
      %497 = vmatpush1.bf16.msra.mxu0 0
      %498 = vmatprep.subr.bf16.mxu0 0
      %499 = vmatpush1.bf16.msra.mxu0 0
      %500 = vmatprep.subr.bf16.mxu0 0
      %501 = vmatpush1.bf16.msra.mxu0 0
      %502 = vmatprep.subr.bf16.mxu0 0
      %503 = vmatpush1.bf16.msra.mxu0 0
      %504 = vmatprep.subr.bf16.mxu0 0
      %505 = vmatpush1.bf16.msra.mxu0 0
      %506 = vmatprep.subr.bf16.mxu0 0
      %507 = vmatpush1.bf16.msra.mxu0 0
      %508 = vmatprep.subr.bf16.mxu0 0
      %509 = vmatpush1.bf16.msra.mxu0 0
      %510 = vmatprep.subr.bf16.mxu0 0
      %511 = vmatpush1.bf16.msra.mxu0 0
      %512 = vmatprep.subr.bf16.mxu0 0
      %513 = vmatpush1.bf16.msra.mxu0 0
      %514 = vmatprep.mubr.bf16.mxu0 0
      %515 = vmatmul.mubr.bf16.gmra.mrb[0].mxu0 %v459
      %v516 = vpop.f32.mrb[0].mxu0
      %v517 = vadd.f32 %v455, %v516
      %v518 = vpop.f32.mrb[0].mxu0
      %v519 = vpop.f32.mrb[0].mxu0
      %v520 = vadd.f32 %v455, %v519
      %v521 = vpop.f32.mrb[0].mxu0
      %522 = vmatprep.mubr.bf16.mxu0 0
      %523 = vmatmul.mubr.bf16.gmra.mrb[0].mxu0 %v462
      %v524 = vpop.f32.mrb[0].mxu0
      %v525 = vadd.f32 %v455, %v524
      %v526 = vpop.f32.mrb[0].mxu0
      %v527 = vpop.f32.mrb[0].mxu0
      %v528 = vadd.f32 %v455, %v527
      %v529 = vpop.f32.mrb[0].mxu0
      %530 = vmatprep.mubr.bf16.mxu0 0
      %531 = vmatmul.mubr.bf16.gmra.mrb[0].mxu0 %v465
      %v532 = vpop.f32.mrb[0].mxu0
      %v533 = vadd.f32 %v455, %v532
      %v534 = vpop.f32.mrb[0].mxu0
      %v535 = vpop.f32.mrb[0].mxu0
      %v536 = vadd.f32 %v455, %v535
      %v537 = vpop.f32.mrb[0].mxu0
      %538 = vmatprep.mubr.bf16.mxu0 0
      %539 = vmatmul.mubr.bf16.gmra.mrb[0].mxu0 %v468
      %v540 = vpop.f32.mrb[0].mxu0
      %v541 = vadd.f32 %v455, %v540
      %v542 = vpop.f32.mrb[0].mxu0
      %v543 = vpop.f32.mrb[0].mxu0
      %v544 = vadd.f32 %v455, %v543
      %v545 = vpop.f32.mrb[0].mxu0
      %546 = vmatprep.mubr.bf16.mxu0 0
      %547 = vmatmul.mubr.bf16.gmra.mrb[0].mxu0 %v471
      %v548 = vpop.f32.mrb[0].mxu0
      %v549 = vadd.f32 %v455, %v548
      %v550 = vpop.f32.mrb[0].mxu0
      %v551 = vpop.f32.mrb[0].mxu0
      %v552 = vadd.f32 %v455, %v551
      %v553 = vpop.f32.mrb[0].mxu0
      %554 = vmatprep.mubr.bf16.mxu0 0
      %555 = vmatmul.mubr.bf16.gmra.mrb[0].mxu0 %v474
      %v556 = vpop.f32.mrb[0].mxu0
      %v557 = vadd.f32 %v455, %v556
      %v558 = vpop.f32.mrb[0].mxu0
      %v559 = vpop.f32.mrb[0].mxu0
      %v560 = vadd.f32 %v455, %v559
      %v561 = vpop.f32.mrb[0].mxu0
      %562 = vmatprep.mubr.bf16.mxu0 0
      %563 = vmatmul.mubr.bf16.gmra.mrb[0].mxu0 %v477
      %v564 = vpop.f32.mrb[0].mxu0
      %v565 = vadd.f32 %v455, %v564
      %v566 = vpop.f32.mrb[0].mxu0
      %v567 = vpop.f32.mrb[0].mxu0
      %v568 = vadd.f32 %v455, %v567
      %v569 = vpop.f32.mrb[0].mxu0
      %570 = vmatprep.mubr.bf16.mxu0 0
      %571 = vmatmul.mubr.bf16.gmra.mrb[0].mxu0 %v480
      %v572 = vpop.f32.mrb[0].mxu0
      %v573 = vadd.f32 %v455, %v572
      %v574 = vpop.f32.mrb[0].mxu0
      %v575 = vpop.f32.mrb[0].mxu0
      %v576 = vadd.f32 %v455, %v575
      %v577 = vpop.f32.mrb[0].mxu0
      %578 = vdwg.mxu0
      %v579 = vtanh.pop %v517
      %v580 = vtanh.pop %v520
      %v581 = vtanh.pop %v525
      %v582 = vtanh.pop %v528
      %v583 = vtanh.pop %v533
      %v584 = vtanh.pop %v536
      %v585 = vtanh.pop %v541
      %v586 = vtanh.pop %v544
      %v587 = vtanh.pop %v549
      %v588 = vtanh.pop %v552
      %v589 = vtanh.pop %v557
      %v590 = vtanh.pop %v560
      %v591 = vtanh.pop %v565
      %v592 = vtanh.pop %v568
      %v593 = vtanh.pop %v573
      %v594 = vtanh.pop %v576
      %v595 = vpack.c.bf16 %v580, %v579
      %v596 = vpack.c.bf16 %v582, %v581
      %v597 = vpack.c.bf16 %v584, %v583
      %v598 = vpack.c.bf16 %v586, %v585
      %v599 = vpack.c.bf16 %v588, %v587
      %v600 = vpack.c.bf16 %v590, %v589
      %v601 = vpack.c.bf16 %v592, %v591
      %v602 = vpack.c.bf16 %v594, %v593
      %v603 = vld [vmem:[%s3] sm:$0xf]
      %v604 = vld [vmem:[%s3 + $0x4] sm:$0xf]
      %v605 = vld [vmem:[%s3 + $0x8] sm:$0xf]
      %v606 = vld [vmem:[%s3 + $0xc] sm:$0xf]
      %v611 = vunpack.c.l.b16 %v603
      %v612 = vunpack.c.l.b16 %v604
      %v613 = vunpack.c.l.b16 %v605
      %v614 = vunpack.c.l.b16 %v606
      %v615 = vpack.c.b16 %v612, %v611
      %v616 = vpack.c.b16 %v614, %v613
      %619 = vrot.lane.b32.xlu0 %v262, 32
      %v620 = vpop.permute.xlu0 %619
      %v623 = vsel %vm276, %v595, 0
      %v626 = vsel %vm276, %v596, 0
      %v629 = vsel %vm276, %v597, 0
      %v632 = vsel %vm276, %v598, 0
      %v635 = vsel %vm276, %v599, 0
      %v638 = vsel %vm276, %v600, 0
      %v641 = vsel %vm276, %v601, 0
      %v644 = vsel %vm276, %v602, 0
      %646 = vmatprep.subr.bf16.mxu0 0
      %647 = vmatpush1.bf16.msra.mxu0 %v615
      %648 = vmatprep.subr.bf16.mxu0 0
      %649 = vmatpush1.bf16.msra.mxu0 %v616
      %650 = vmatprep.subr.bf16.mxu0 0
      %651 = vmatpush1.bf16.msra.mxu0 0
      %652 = vmatprep.subr.bf16.mxu0 0
      %653 = vmatpush1.bf16.msra.mxu0 0
      %654 = vmatprep.subr.bf16.mxu0 0
      %655 = vmatpush1.bf16.msra.mxu0 0
      %656 = vmatprep.subr.bf16.mxu0 0
      %657 = vmatpush1.bf16.msra.mxu0 0
      %658 = vmatprep.subr.bf16.mxu0 0
      %659 = vmatpush1.bf16.msra.mxu0 0
      %660 = vmatprep.subr.bf16.mxu0 0
      %661 = vmatpush1.bf16.msra.mxu0 0
      %662 = vmatprep.subr.bf16.mxu0 0
      %663 = vmatpush1.bf16.msra.mxu0 0
      %664 = vmatprep.subr.bf16.mxu0 0
      %665 = vmatpush1.bf16.msra.mxu0 0
      %666 = vmatprep.subr.bf16.mxu0 0
      %667 = vmatpush1.bf16.msra.mxu0 0
      %668 = vmatprep.subr.bf16.mxu0 0
      %669 = vmatpush1.bf16.msra.mxu0 0
      %670 = vmatprep.subr.bf16.mxu0 0
      %671 = vmatpush1.bf16.msra.mxu0 0
      %672 = vmatprep.subr.bf16.mxu0 0
      %673 = vmatpush1.bf16.msra.mxu0 0
      %674 = vmatprep.subr.bf16.mxu0 0
      %675 = vmatpush1.bf16.msra.mxu0 0
      %676 = vmatprep.subr.bf16.mxu0 0
      %677 = vmatpush1.bf16.msra.mxu0 0
      %678 = vmatprep.mubr.bf16.mxu0 0
      %679 = vmatmul.mubr.bf16.gmra.mrb[0].mxu0 %v623
      %v680 = vpop.f32.mrb[0].mxu0
      %v681 = vadd.f32 %v620, %v680
      %v682 = vpop.f32.mrb[0].mxu0
      %v683 = vpop.f32.mrb[0].mxu0
      %v684 = vadd.f32 %v620, %v683
      %v685 = vpop.f32.mrb[0].mxu0
      %686 = vmatprep.mubr.bf16.mxu0 0
      %687 = vmatmul.mubr.bf16.gmra.mrb[0].mxu0 %v626
      %v688 = vpop.f32.mrb[0].mxu0
      %v689 = vadd.f32 %v620, %v688
      %v690 = vpop.f32.mrb[0].mxu0
      %v691 = vpop.f32.mrb[0].mxu0
      %v692 = vadd.f32 %v620, %v691
      %v693 = vpop.f32.mrb[0].mxu0
      %694 = vmatprep.mubr.bf16.mxu0 0
      %695 = vmatmul.mubr.bf16.gmra.mrb[0].mxu0 %v629
      %v696 = vpop.f32.mrb[0].mxu0
      %v697 = vadd.f32 %v620, %v696
      %v698 = vpop.f32.mrb[0].mxu0
      %v699 = vpop.f32.mrb[0].mxu0
      %v700 = vadd.f32 %v620, %v699
      %v701 = vpop.f32.mrb[0].mxu0
      %702 = vmatprep.mubr.bf16.mxu0 0
      %703 = vmatmul.mubr.bf16.gmra.mrb[0].mxu0 %v632
      %v704 = vpop.f32.mrb[0].mxu0
      %v705 = vadd.f32 %v620, %v704
      %v706 = vpop.f32.mrb[0].mxu0
      %v707 = vpop.f32.mrb[0].mxu0
      %v708 = vadd.f32 %v620, %v707
      %v709 = vpop.f32.mrb[0].mxu0
      %710 = vmatprep.mubr.bf16.mxu0 0
      %711 = vmatmul.mubr.bf16.gmra.mrb[0].mxu0 %v635
      %v712 = vpop.f32.mrb[0].mxu0
      %v713 = vadd.f32 %v620, %v712
      %v714 = vpop.f32.mrb[0].mxu0
      %v715 = vpop.f32.mrb[0].mxu0
      %v716 = vadd.f32 %v620, %v715
      %v717 = vpop.f32.mrb[0].mxu0
      %718 = vmatprep.mubr.bf16.mxu0 0
      %719 = vmatmul.mubr.bf16.gmra.mrb[0].mxu0 %v638
      %v720 = vpop.f32.mrb[0].mxu0
      %v721 = vadd.f32 %v620, %v720
      %v722 = vpop.f32.mrb[0].mxu0
      %v723 = vpop.f32.mrb[0].mxu0
      %v724 = vadd.f32 %v620, %v723
      %v725 = vpop.f32.mrb[0].mxu0
      %726 = vmatprep.mubr.bf16.mxu0 0
      %727 = vmatmul.mubr.bf16.gmra.mrb[0].mxu0 %v641
      %v728 = vpop.f32.mrb[0].mxu0
      %v729 = vadd.f32 %v620, %v728
      %v730 = vpop.f32.mrb[0].mxu0
      %v731 = vpop.f32.mrb[0].mxu0
      %v732 = vadd.f32 %v620, %v731
      %v733 = vpop.f32.mrb[0].mxu0
      %734 = vmatprep.mubr.bf16.mxu0 0
      %735 = vmatmul.mubr.bf16.gmra.mrb[0].mxu0 %v644
      %v736 = vpop.f32.mrb[0].mxu0
      %v737 = vadd.f32 %v620, %v736
      %v738 = vpop.f32.mrb[0].mxu0
      %v739 = vpop.f32.mrb[0].mxu0
      %v740 = vadd.f32 %v620, %v739
      %v741 = vpop.f32.mrb[0].mxu0
      %742 = vdwg.mxu0
      %v743 = vmax.f32 %v681, 0.0
      %v744 = vmax.f32 %v684, 0.0
      %v745 = vmax.f32 %v689, 0.0
      %v746 = vmax.f32 %v692, 0.0
      %v747 = vmax.f32 %v697, 0.0
      %v748 = vmax.f32 %v700, 0.0
      %v749 = vmax.f32 %v705, 0.0
      %v750 = vmax.f32 %v708, 0.0
      %v751 = vmax.f32 %v713, 0.0
      %v752 = vmax.f32 %v716, 0.0
      %v753 = vmax.f32 %v721, 0.0
      %v754 = vmax.f32 %v724, 0.0
      %v755 = vmax.f32 %v729, 0.0
      %v756 = vmax.f32 %v732, 0.0
      %v757 = vmax.f32 %v737, 0.0
      %v758 = vmax.f32 %v740, 0.0
      %vm759 = vcmask 130048
      %760 = vst.msk [vmem:[%s226] sm:$0xff] %vm759, %v743
      %761 = vst.msk [vmem:[%s226 + $0x8] sm:$0xff] %vm759, %v744
      %762 = vst.msk [vmem:[%s226 + $0x10] sm:$0xff] %vm759, %v745
      %763 = vst.msk [vmem:[%s226 + $0x18] sm:$0xff] %vm759, %v746
      %764 = vst.msk [vmem:[%s226 + $0x20] sm:$0xff] %vm759, %v747
      %765 = vst.msk [vmem:[%s226 + $0x28] sm:$0xff] %vm759, %v748
      %766 = vst.msk [vmem:[%s226 + $0x30] sm:$0xff] %vm759, %v749
      %767 = vst.msk [vmem:[%s226 + $0x38] sm:$0xff] %vm759, %v750
      %768 = vst.msk [vmem:[%s226 + $0x40] sm:$0xff] %vm759, %v751
      %769 = vst.msk [vmem:[%s226 + $0x48] sm:$0xff] %vm759, %v752
      %770 = vst.msk [vmem:[%s226 + $0x50] sm:$0xff] %vm759, %v753
      %771 = vst.msk [vmem:[%s226 + $0x58] sm:$0xff] %vm759, %v754
      %772 = vst.msk [vmem:[%s226 + $0x60] sm:$0xff] %vm759, %v755
      %773 = vst.msk [vmem:[%s226 + $0x68] sm:$0xff] %vm759, %v756
      %774 = vst.msk [vmem:[%s226 + $0x70] sm:$0xff] %vm759, %v757
      %775 = vst.msk [vmem:[%s226 + $0x78] sm:$0xff] %vm759, %v758
      %s776 = smul.u32 16, %s16
      %p777 = scmp.lt.s32.totalorder %s776, 31
      %s778 = scalar_select %p777, %s776, 31
      %s779 = smul.addr %s778, 8
      %s780 = scalar_lea.vmem %s5, %s779
      // Predicated region
      $region41: #{tpu_custom_call.1} parent=39 // pred_check
        %p781 = pneg %p144
      $region42: #{tpu_custom_call.1} parent=39 // pred_check_branch
        %783 = sbr.rel (%p781) target = $region44
      $region43: #{tpu_custom_call.1} parent=39 // pred_region
        %s784 = smul.u32 16, %s16
      $region44: #{tpu_custom_call.1} parent=39 // pred_fallthru
        _
    $region40: #{tpu_custom_call.1} parent=5 // pred_fallthru
      _
    %p785 = scmp.le.s32.totalorder 2, %s11
    // Predicated region
    $region45: #{tpu_custom_call.1} parent=5 // pred_check
      %p786 = pneg %p785
    $region46: #{tpu_custom_call.1} parent=5 // pred_check_branch
      %788 = sbr.rel (%p786) target = $region48
    $region47: #{tpu_custom_call.1} parent=5 // pred_region
      %s789 = ssub.s32 %s11, 2
      // Predicated region
      $region49: #{tpu_custom_call.1} parent=47 // pred_check
        %p790 = pneg %p150
      $region50: #{tpu_custom_call.1} parent=47 // pred_check_branch
        %792 = sbr.rel (%p790) target = $region52
      $region51: #{tpu_custom_call.1} parent=47 // pred_region
        %s793 = smul.u32 16, %s17
        %p794 = scmp.lt.s32.totalorder %s793, 31
        %s795 = scalar_select %p794, %s793, 31
        %s796 = smul.addr %s795, 8
        %s797 = scalar_lea.vmem %s5, %s796
      $region52: #{tpu_custom_call.1} parent=47 // pred_fallthru
        _
    $region48: #{tpu_custom_call.1} parent=5 // pred_fallthru
      _
  $region6: #{tpu_custom_call.1} parent=0 // loop_footer
    %s15 = sadd.s32 1, %s11
  $region7: #{tpu_custom_call.1} parent=0 // loop_footer_branch
    %10 = sbr.rel target = $region3
  $region8: #{tpu_custom_call.1} parent=0 // loop_exit
    _

</llo_original>
